<compile_context>
chip_gen: v6e
topology: v6e:2x2x1
jax: 0.10.0
libtpu: 0.0.40
codegen_flags: <defaults>
</compile_context>

<pallas_src>
import jax
import jax.numpy as jnp
from jax.experimental import pallas as pl
from jax.experimental.pallas import tpu as pltpu

ALPHA = 1.0
GAMMA = 2.0  # exploited below as an exact square

_LANES = 128
_SUBLANES = 8
# Padding elements that contribute exactly 0 loss:
#   x=1e6, t=1  ->  bce = 1e6 - 1e6 + log1p(exp(-1e6)) = 0  ->  pt = 1  ->  focal = 0
_PAD_LOGIT = 1e6
_PAD_TARGET = 1.0


def _focal_loss_partial_kernel(x_ref, t_ref, part_ref):
    x = x_ref[...].astype(jnp.float32)
    t = t_ref[...].astype(jnp.float32)

    # Numerically stable BCE-with-logits (matches torch.nn.BCEWithLogitsLoss):
    #   bce = max(x, 0) - x*t + log1p(exp(-|x|))
    bce = jnp.maximum(x, 0.0) - x * t + jnp.log1p(jnp.exp(-jnp.abs(x)))

    pt = jnp.exp(-bce)
    one_minus_pt = 1.0 - pt
    # gamma == 2.0 -> exact square (avoids pow == exp(log(.)) on the EUP).
    focal = ALPHA * (one_minus_pt * one_minus_pt) * bce

    # Sublane-aligned partial reduction: (rows,128) -> (rows/8, 8, 128) -> (8,128).
    # Pure vreg adds (VALU); no cross-lane XLU work or scalar RMW in the steady state.
    part_ref[...] = jnp.sum(focal.reshape(-1, _SUBLANES, _LANES), axis=0)


def focal_loss(inputs, targets, reduction="mean", *, block_rows=2048):
    """Focal loss over logits `inputs` and binary `targets` (same shape, any rank)."""
    assert inputs.shape == targets.shape
    total_elems = 1
    for d in inputs.shape:
        total_elems *= d
    assert total_elems > 0

    # Flatten to a lane-dense layout.
    flat_x = inputs.reshape(-1)
    flat_t = targets.reshape(-1)

    # Clamp the block so tiny problems don't get padded to 1 MiB; keep rows % 8 == 0.
    rows_needed = pl.cdiv(total_elems, _LANES)
    block_rows = min(block_rows, ((rows_needed + _SUBLANES - 1) // _SUBLANES) * _SUBLANES)
    block_rows = max(_SUBLANES, ((block_rows + _SUBLANES - 1) // _SUBLANES) * _SUBLANES)

    block_elems = block_rows * _LANES
    num_blocks = pl.cdiv(total_elems, block_elems)
    padded_elems = num_blocks * block_elems
    pad = padded_elems - total_elems
    if pad:
        flat_x = jnp.concatenate(
            [flat_x, jnp.full((pad,), _PAD_LOGIT, dtype=flat_x.dtype)])
        flat_t = jnp.concatenate(
            [flat_t, jnp.full((pad,), _PAD_TARGET, dtype=flat_t.dtype)])

    rows = padded_elems // _LANES
    x2 = flat_x.reshape(rows, _LANES)
    t2 = flat_t.reshape(rows, _LANES)

    in_bytes = x2.size * x2.dtype.itemsize + t2.size * t2.dtype.itemsize
    out_bytes = num_blocks * _SUBLANES * _LANES * 4

    partials = pl.pallas_call(
        _focal_loss_partial_kernel,
        out_shape=jax.ShapeDtypeStruct((num_blocks * _SUBLANES, _LANES), jnp.float32),
        grid_spec=pltpu.PrefetchScalarGridSpec(
            num_scalar_prefetch=0,
            grid=(num_blocks,),
            in_specs=[
                pl.BlockSpec((block_rows, _LANES), lambda i: (i, 0)),
                pl.BlockSpec((block_rows, _LANES), lambda i: (i, 0)),
            ],
            out_specs=pl.BlockSpec((_SUBLANES, _LANES), lambda i: (i, 0)),
        ),
        compiler_params=pltpu.CompilerParams(
            dimension_semantics=("parallel",),
        ),
        cost_estimate=pl.CostEstimate(
            flops=10 * padded_elems,
            transcendentals=3 * padded_elems,
            bytes_accessed=in_bytes + out_bytes,
        ),
    )(x2, t2)

    total = jnp.sum(partials)  # tiny (num_blocks*8, 128) reduction in the wrapper

    if reduction == "mean":
        return total / jnp.float32(total_elems)
    elif reduction == "sum":
        return total
    else:
        # TODO(synk): reduction='none' would need an elementwise-output kernel; the
        # default module config ('mean') is fully covered here.
        raise NotImplementedError("reduction='none' not implemented in this kernel")


if __name__ == "__main__":
    key = jax.random.PRNGKey(0)
    k1, k2 = jax.random.split(key)

    # Small multi-label classification batch; C=100 deliberately not a multiple of 128
    # to exercise the flatten + zero-loss-padding path.
    N, C = 16, 100
    logits = jax.random.normal(k1, (N, C), dtype=jnp.float32)
    targets = (jax.random.uniform(k2, (N, C)) > 0.5).astype(jnp.float32)

    loss = focal_loss(logits, targets, reduction="mean")
    loss = jax.block_until_ready(loss)

    # Pure-JAX reference check (same math, no Pallas).
    bce = jnp.maximum(logits, 0.0) - logits * targets + jnp.log1p(jnp.exp(-jnp.abs(logits)))
    pt = jnp.exp(-bce)
    ref = jnp.mean(ALPHA * (1.0 - pt) ** 2 * bce)
    assert jnp.allclose(loss, ref, rtol=1e-5, atol=1e-6), (loss, ref)

    loss_sum = jax.block_until_ready(focal_loss(logits, targets, reduction="sum"))
    ref_sum = jnp.sum(ALPHA * (1.0 - pt) ** 2 * bce)
    assert jnp.allclose(loss_sum, ref_sum, rtol=1e-5, atol=1e-4), (loss_sum, ref_sum)

    print("KERNEL_OK")
</pallas_src>

<mosaic_0001>
module attributes {stable_mosaic.version = 11 : i64} {
  func.func @_focal_loss_partial_kernel(%arg0: i32, %arg1: memref<16x128xf32, #tpu.memory_space<vmem>>, %arg2: memref<16x128xf32, #tpu.memory_space<vmem>>, %arg3: memref<8x128xf32, #tpu.memory_space<vmem>>) attributes {dimension_semantics = [#tpu.dimension_semantics<parallel>], iteration_bounds = array<i64: 1>, scalar_prefetch = 0 : i64, scratch_operands = 0 : i64, tpu.core_type = #tpu.core_type<tc>, window_params = [{transform_indices = @transform_0, window_bounds = array<i64: 16, 128>}, {transform_indices = @transform_1, window_bounds = array<i64: 16, 128>}, {transform_indices = @transform_2, window_bounds = array<i64: 8, 128>}]} {
    %c0 = arith.constant 0 : index
    %c0_0 = arith.constant 0 : index
    %0 = vector.load %arg1[%c0, %c0_0] : memref<16x128xf32, #tpu.memory_space<vmem>>, vector<16x128xf32>
    %c0_1 = arith.constant 0 : index
    %c0_2 = arith.constant 0 : index
    %1 = vector.load %arg2[%c0_1, %c0_2] : memref<16x128xf32, #tpu.memory_space<vmem>>, vector<16x128xf32>
    %cst = arith.constant 0.000000e+00 : f32
    %2 = vector.broadcast %cst : f32 to vector<16x128xf32>
    %3 = arith.maximumf %0, %2 : vector<16x128xf32>
    %4 = arith.mulf %0, %1 : vector<16x128xf32>
    %5 = arith.subf %3, %4 : vector<16x128xf32>
    %6 = math.absf %0 : vector<16x128xf32>
    %cst_3 = arith.constant 0.000000e+00 : f32
    %7 = vector.broadcast %cst_3 : f32 to vector<16x128xf32>
    %8 = arith.subf %7, %6 : vector<16x128xf32>
    %9 = math.exp %8 : vector<16x128xf32>
    %10 = math.log1p %9 : vector<16x128xf32>
    %11 = arith.addf %5, %10 : vector<16x128xf32>
    %cst_4 = arith.constant 0.000000e+00 : f32
    %12 = vector.broadcast %cst_4 : f32 to vector<16x128xf32>
    %13 = arith.subf %12, %11 : vector<16x128xf32>
    %14 = math.exp %13 : vector<16x128xf32>
    %cst_5 = arith.constant 1.000000e+00 : f32
    %15 = vector.broadcast %cst_5 : f32 to vector<16x128xf32>
    %16 = arith.subf %15, %14 : vector<16x128xf32>
    %17 = arith.mulf %16, %16 : vector<16x128xf32>
    %cst_6 = arith.constant 1.000000e+00 : f32
    %18 = vector.broadcast %cst_6 : f32 to vector<16x128xf32>
    %19 = arith.mulf %18, %17 : vector<16x128xf32>
    %20 = arith.mulf %19, %11 : vector<16x128xf32>
    %21 = vector.shape_cast %20 : vector<16x128xf32> to vector<2x8x128xf32>
    %cst_7 = arith.constant dense<0.000000e+00> : vector<8x128xf32>
    %22 = vector.multi_reduction <add>, %21, %cst_7 [0] : vector<2x8x128xf32> to vector<8x128xf32>
    %c0_8 = arith.constant 0 : index
    %c0_9 = arith.constant 0 : index
    %23 = vector.load %arg3[%c0_8, %c0_9] : memref<8x128xf32, #tpu.memory_space<vmem>>, vector<8x128xf32>
    tpu.vector_store %arg3[%c0_8, %c0_9], %22 {strides = array<i32>} : memref<8x128xf32, #tpu.memory_space<vmem>>, vector<8x128xf32>,
    return
  }
  func.func @transform_0(%arg0: i32) -> (i32, i32) {
    %c0_i32 = arith.constant 0 : i32
    %c0_i32_0 = arith.constant 0 : i32
    return %arg0, %c0_i32 : i32, i32
  }
  func.func @transform_1(%arg0: i32) -> (i32, i32) {
    %c0_i32 = arith.constant 0 : i32
    %c0_i32_0 = arith.constant 0 : i32
    return %arg0, %c0_i32 : i32, i32
  }
  func.func @transform_2(%arg0: i32) -> (i32, i32) {
    %c0_i32 = arith.constant 0 : i32
    %c0_i32_0 = arith.constant 0 : i32
    return %arg0, %c0_i32 : i32, i32
  }
}

</mosaic_0001>

<llo_original>
// kernel: tpu_custom_call.1
$region0: #{tpu_custom_call.1}
  #allocation0 [shape = 'u32[]', space=smem, size = 0x4, offset = 0x4, fixed_abs, tag = 'smem constant byte address 0x4 - core index']
  #allocation1 [shape = 'u32[144,128]{1,0:T(1,128)}', space=vmem, size = 0x12000, scoped, tag = 'internal scratch']
  %s0 = inlined_call_operand.hbm [shape: f32[16,128], index: 0, kind: input, shape index: {}]
  %s1 = inlined_call_operand.hbm [shape: f32[16,128], index: 1, kind: input, shape index: {}]
  %s2 = inlined_call_operand.hbm [shape: f32[8,128], index: 2, kind: output, shape index: {}]
  %s3 = sld [smem:[#allocation0]]
  $region26: #{tpu_custom_call.1} parent=0
    _
  %s5 = ssub.s32 1, %s3
  %s6 = scalar_select 0, %s5, %s3
  $region1: #{tpu_custom_call.1} parent=0
    #allocation2 [shape = 'u8[8192]{0}', space=vmem, size = 0x2000, scoped, tag = 'input window, operand 0, single buffered']
    #allocation3 [shape = 's32[1]{0}', space=sflag, size = 0x4, scoped, tag = 'scoped memory for tpu_custom_call.1']
    #allocation4 [shape = 's32[1]{0}', space=sflag, size = 0x4, scoped, tag = 'scoped memory for tpu_custom_call.1']
    #allocation5 [shape = 'u8[8192]{0}', space=vmem, size = 0x2000, scoped, tag = 'input window, operand 1, single buffered']
    #allocation6 [shape = 's32[1]{0}', space=sflag, size = 0x4, scoped, tag = 'scoped memory for tpu_custom_call.1']
    #allocation7 [shape = 'u8[4096]{0}', space=vmem, size = 0x1000, scoped, tag = 'output window, operand 0, single buffered']
    %7 = vsyncpa [#allocation3], 0
    %8 = vsyncpa [#allocation6], 0
    %9 = vsyncpa [#allocation4], 0
    // Predicated region
    $region2: #{tpu_custom_call.1} parent=1 // pred_check
      _
    $region3: #{tpu_custom_call.1} parent=1 // pred_check_branch
      %11 = sbr.rel (0) target = $region5
    $region4: #{tpu_custom_call.1} parent=1 // pred_region
      %s13 = ssub.s32 256, 256
      %14 = vsyncadd [#allocation3], %s13
      %s15 = sshll.u32 [#allocation2], 4
      %s16 = int_to_ptr.vmem [resolvable:$true] %s15
      %21 = dma.hbm_to_vmem [thread:$0]  %s0, 256, %s16, [#allocation3], 128, 128, 8
    $region5: #{tpu_custom_call.1} parent=1 // pred_fallthru
      _
    // Predicated region
    $region6: #{tpu_custom_call.1} parent=1 // pred_check
      _
    $region7: #{tpu_custom_call.1} parent=1 // pred_check_branch
      %23 = sbr.rel (0) target = $region9
    $region8: #{tpu_custom_call.1} parent=1 // pred_region
      %s25 = ssub.s32 256, 256
      %26 = vsyncadd [#allocation6], %s25
      %s27 = sshll.u32 [#allocation5], 4
      %s28 = int_to_ptr.vmem [resolvable:$true] %s27
      %33 = dma.hbm_to_vmem [thread:$0]  %s1, 256, %s28, [#allocation6], 128, 128, 8
    $region9: #{tpu_custom_call.1} parent=1 // pred_fallthru
      _
    // Predicated region
    $region10: #{tpu_custom_call.1} parent=1 // pred_check
      _
    $region11: #{tpu_custom_call.1} parent=1 // pred_check_branch
      %35 = sbr.rel (0) target = $region13
    $region12: #{tpu_custom_call.1} parent=1 // pred_region
      %36 = dma.done [#allocation3], 256
    $region13: #{tpu_custom_call.1} parent=1 // pred_fallthru
      _
    // Predicated region
    $region14: #{tpu_custom_call.1} parent=1 // pred_check
      _
    $region15: #{tpu_custom_call.1} parent=1 // pred_check_branch
      %38 = sbr.rel (0) target = $region17
    $region16: #{tpu_custom_call.1} parent=1 // pred_region
      %39 = dma.done [#allocation6], 256
    $region17: #{tpu_custom_call.1} parent=1 // pred_fallthru
      _
    %v40 = vld [vmem:[#allocation2] sm:$0xff]
    %v41 = vld [vmem:[#allocation2 + $0x8] sm:$0xff]
    %v42 = vld [vmem:[#allocation5] sm:$0xff]
    %v43 = vld [vmem:[#allocation5 + $0x8] sm:$0xff]
    %v44 = vmax.f32 %v40, 0.0
    %v45 = vmax.f32 %v41, 0.0
    %v46 = vmul.f32 %v40, %v42
    %v47 = vmul.f32 %v41, %v43
    %v48 = vsub.f32 %v44, %v46
    %v49 = vsub.f32 %v45, %v47
    %v50 = vand.u32 2147483647, %v40
    %v51 = vand.u32 2147483647, %v41
    %v52 = vsub.f32 0.0, %v50
    %v53 = vsub.f32 0.0, %v51
    %v54 = vmul.f32 %v52, 1.442695
    %v55 = vpow.pop %v54
    %v56 = vmul.f32 %v53, 1.442695
    %v57 = vpow.pop %v56
    %v58 = vadd.f32 %v55, 1.0
    %v59 = vlog2.pop %v58
    %v60 = vmul.f32 %v59, 0.6931472
    %v61 = vmul.f32 -0.5, %v55
    %v62 = vadd.f32 %v61, 1.0
    %v63 = vmul.f32 %v62, %v55
    %v64 = vand.u32 2147483647, %v55
    %vm65 = vcmp.lt.f32.partialorder %v64, 0.0004427343
    %v66 = vsel %vm65, %v63, %v60
    %v67 = vadd.f32 %v57, 1.0
    %v68 = vlog2.pop %v67
    %v69 = vmul.f32 %v68, 0.6931472
    %v70 = vmul.f32 -0.5, %v57
    %v71 = vadd.f32 %v70, 1.0
    %v72 = vmul.f32 %v71, %v57
    %v73 = vand.u32 2147483647, %v57
    %vm74 = vcmp.lt.f32.partialorder %v73, 0.0004427343
    %v75 = vsel %vm74, %v72, %v69
    %v76 = vadd.f32 %v48, %v66
    %v77 = vadd.f32 %v49, %v75
    %v78 = vsub.f32 0.0, %v76
    %v79 = vsub.f32 0.0, %v77
    %v80 = vmul.f32 %v78, 1.442695
    %v81 = vpow.pop %v80
    %v82 = vmul.f32 %v79, 1.442695
    %v83 = vpow.pop %v82
    %v84 = vsub.f32 1.0, %v81
    %v85 = vsub.f32 1.0, %v83
    %v86 = vmul.f32 %v84, %v84
    %v87 = vmul.f32 %v85, %v85
    %v88 = vmul.f32 %v86, %v76
    %v89 = vmul.f32 %v87, %v77
    %v90 = vadd.f32 %v88, %v89
    %91 = vst [vmem:[#allocation7] sm:$0xff] %v90
    // Predicated region
    $region18: #{tpu_custom_call.1} parent=1 // pred_check
      _
    $region19: #{tpu_custom_call.1} parent=1 // pred_check_branch
      %93 = sbr.rel (0) target = $region21
    $region20: #{tpu_custom_call.1} parent=1 // pred_region
      %s95 = ssub.s32 128, 128
      %96 = vsyncadd [#allocation4], %s95
      %s98 = sshll.u32 [#allocation7], 4
      %s99 = int_to_ptr.vmem [resolvable:$true] %s98
      %101 = dma.vmem_to_hbm [thread:$0]  %s99, 128, %s2, [#allocation4]
    $region21: #{tpu_custom_call.1} parent=1 // pred_fallthru
      _
    // Predicated region
    $region22: #{tpu_custom_call.1} parent=1 // pred_check
      _
    $region23: #{tpu_custom_call.1} parent=1 // pred_check_branch
      %103 = sbr.rel (0) target = $region25
    $region24: #{tpu_custom_call.1} parent=1 // pred_region
      %104 = dma.done [#allocation4], 128
    $region25: #{tpu_custom_call.1} parent=1 // pred_fallthru
      _
    %105 = vsyncpa [#allocation3], 1
    %106 = vsyncpa [#allocation6], 1
    %107 = vsyncpa [#allocation4], 1

</llo_original>
